<compile_context>
chip_gen: v5e
topology: v5e:2x2
jax: 0.10.0
libtpu: 0.0.40
codegen_flags: <defaults>
</compile_context>

<pallas_src>
import functools

import jax
import jax.numpy as jnp
from jax.experimental import pallas as pl
from jax.experimental.pallas import tpu as pltpu

LANES = 128
SUBLANES = 8
SUB = SUBLANES * LANES  # elements per (8, 128) sub-block


def _num_tensorcores():
    """2 on 2-TensorCore parts (v7x), 1 on v5e/v6e (or non-TPU fallback)."""
    try:
        kind = jax.devices()[0].device_kind.lower()
    except Exception:  # pragma: no cover - defensive
        return 1
    return 2 if "v7" in kind else 1


def _dice_partial_kernel(x_ref, t_ref, out_ref, *,
                         tile_r8, valid_r8, mask_start, ignore_label):
    c = pl.program_id(0)          # parallel (core-split) axis
    s = pl.program_id(1)          # sequential reduction axis
    n_s = pl.num_programs(1)

    @pl.when(s == 0)
    def _():
        out_ref[...] = jnp.zeros_like(out_ref)

    x = x_ref[...].astype(jnp.float32)
    t = t_ref[...].astype(jnp.float32)

    # Static specialization: only the ignore_label variant pays for these ops.
    if ignore_label is not None:
        keep = t != jnp.float32(ignore_label)
        x = jnp.where(keep, x, 0.0)
        t = jnp.where(keep, t, 0.0)

    def accumulate(xv, tv):
        # Summing over the leading axis of (tile_r8, 8, 128) is pure vreg adds
        # on the VPU; cross-lane reduction happens once, in JAX, on the tiny
        # per-core partials.
        ps = xv + tv
        out_ref[0, 0] += jnp.sum(xv * tv, axis=0)   # intersection partial
        out_ref[0, 1] += jnp.sum(ps * ps, axis=0)   # sum((x+t)^2) partial

    if mask_start is None:
        # Exact tiling: no mask anywhere.
        accumulate(x, t)
    else:
        blk = c * n_s + s          # intended (unclamped) block index

        @pl.when(blk < mask_start)
        def _():
            accumulate(x, t)

        @pl.when(blk >= mask_start)
        def _():
            # Partial last block and/or duplicated (clamped) blocks: zero the
            # invalid rows with jnp.where so unspecified OOB block contents
            # (possible NaN/Inf) cannot contaminate the sums.
            sub_idx = blk * tile_r8 + jax.lax.broadcasted_iota(
                jnp.int32, x.shape, 0)
            valid = sub_idx < valid_r8
            accumulate(jnp.where(valid, x, 0.0), jnp.where(valid, t, 0.0))


def _partial_sums_jnp(x32, t32, ignore_label):
    if ignore_label is not None:
        keep = t32 != jnp.float32(ignore_label)
        x32 = jnp.where(keep, x32, 0.0)
        t32 = jnp.where(keep, t32, 0.0)
    s = x32 + t32
    return jnp.sum(x32 * t32), jnp.sum(s * s)


def _finalize(inter, sumsq):
    union = sumsq - 2.0 * inter          # sum(x^2 + t^2)
    smooth = jnp.float32(1e-6)
    return (1.0 - (2.0 * inter + smooth) / (union + smooth)).astype(jnp.float32)


@functools.partial(jax.jit,
                   static_argnames=("ignore_label", "num_cores", "tile_bytes"))
def _dice_loss_impl(x, target, *, ignore_label, num_cores, tile_bytes):
    n = x.size
    # TODO(synk): the flatten/reshape below is only a free bitcast when the
    # trailing dims are (8,128)-layout compatible; for awkward (H, W) shapes
    # XLA may insert a relayout copy of both operands.  A shape-native
    # BlockSpec would avoid that extra HBM read+write.
    xf = x.reshape(-1)
    tf = target.reshape(-1)

    r8 = n // SUB                         # number of complete (8, 128) blocks
    tail = n - r8 * SUB

    if r8 == 0:
        # Whole input smaller than one (8,128) tile: plain jnp is optimal.
        inter, sumsq = _partial_sums_jnp(xf.astype(jnp.float32),
                                         tf.astype(jnp.float32), ignore_label)
        return _finalize(inter, sumsq)

    x3 = xf[: r8 * SUB].reshape(r8, SUBLANES, LANES)
    t3 = tf[: r8 * SUB].reshape(r8, SUBLANES, LANES)

    # Block size from an HBM-traffic budget (~tile_bytes per input per buffer),
    # scaled by dtype width so narrow dtypes keep the per-step DMA long.
    x_item = jnp.dtype(x.dtype).itemsize
    t_item = jnp.dtype(target.dtype).itemsize
    tile_r8 = max(1, min(tile_bytes // (SUB * x_item), r8))
    total_blocks = -(-r8 // tile_r8)
    nc = num_cores if total_blocks >= num_cores else 1
    steps = -(-total_blocks // nc)

    needs_elem_mask = total_blocks * tile_r8 != r8     # last block partial
    needs_dup_mask = nc * steps != total_blocks        # duplicated (clamped)
    if needs_elem_mask:
        mask_start = total_blocks - 1
    elif needs_dup_mask:
        mask_start = total_blocks
    else:
        mask_start = None

    def in_map(c, s):
        blk = c * steps + s
        # Clamp fully-out-of-range (duplicated) blocks onto valid memory; the
        # in-kernel mask zeroes their contribution.
        return (jnp.minimum(blk, total_blocks - 1), 0, 0)

    kernel = functools.partial(
        _dice_partial_kernel,
        tile_r8=tile_r8,
        valid_r8=r8,
        mask_start=mask_start,
        ignore_label=ignore_label,
    )

    # Explicit VMEM budget: 2 inputs x 2 pipeline buffers + headroom.  Raises
    # v5e's 16 MiB scoped default; stays well under v7x's 64 MiB physical VMEM.
    block_bytes = tile_r8 * SUB * (x_item + t_item)
    vmem_limit = int(min(max(2 * block_bytes + (8 << 20), 24 << 20), 56 << 20))

    partials = pl.pallas_call(
        kernel,
        out_shape=jax.ShapeDtypeStruct((nc, 2, SUBLANES, LANES), jnp.float32),
        grid_spec=pltpu.PrefetchScalarGridSpec(
            num_scalar_prefetch=0,
            grid=(nc, steps),
            in_specs=[
                pl.BlockSpec((tile_r8, SUBLANES, LANES), in_map),
                pl.BlockSpec((tile_r8, SUBLANES, LANES), in_map),
            ],
            # Constant block index along the sequential axis -> the output
            # block stays VMEM-resident and serves as the accumulator.
            out_specs=pl.BlockSpec((1, 2, SUBLANES, LANES),
                                   lambda c, s: (c, 0, 0, 0)),
        ),
        compiler_params=pltpu.CompilerParams(
            dimension_semantics=("parallel", "arbitrary"),
            vmem_limit_bytes=vmem_limit),
    )(x3, t3)

    inter = jnp.sum(partials[:, 0])
    sumsq = jnp.sum(partials[:, 1])

    if tail:
        # <1024-element tail: compute its contribution with plain jnp instead
        # of padding/copying both full inputs.
        ti, ts = _partial_sums_jnp(xf[r8 * SUB:].astype(jnp.float32),
                                   tf[r8 * SUB:].astype(jnp.float32),
                                   ignore_label)
        inter = inter + ti
        sumsq = sumsq + ts

    return _finalize(inter, sumsq)


def dice_loss(x, target, ignore_label=None, tile_bytes=4 << 20):
    """Pallas implementation of DiceLoss.forward (value-equivalent)."""
    assert x.shape == target.shape, (x.shape, target.shape)
    return _dice_loss_impl(
        x, target,
        ignore_label=None if ignore_label is None else float(ignore_label),
        num_cores=_num_tensorcores(),
        tile_bytes=int(tile_bytes))


def _dice_loss_ref(x, target, ignore_label=None):
    x = x.astype(jnp.float32)
    t = target.astype(jnp.float32)
    if ignore_label is not None:
        keep = (t != ignore_label).astype(jnp.float32)
        x = x * keep
        t = t * keep
    inter = jnp.sum(x * t)
    union = jnp.sum(x * x + t * t)
    smooth = 1e-6
    return 1.0 - (2.0 * inter + smooth) / (union + smooth)


if __name__ == "__main__":
    key = jax.random.PRNGKey(0)
    k = jax.random.split(key, 10)

    RTOL, ATOL = 5e-5, 1e-5   # FP reordering vs. reference is expected

    # (B, C, H, W) segmentation-style inputs.
    B, C, H, W = 2, 4, 16, 16
    x = jax.random.uniform(k[0], (B, C, H, W), dtype=jnp.float32)
    target = (jax.random.uniform(k[1], (B, C, H, W)) > 0.5).astype(jnp.float32)

    # ignore_label=None path.
    loss = dice_loss(x, target)
    jax.block_until_ready(loss)
    ref = _dice_loss_ref(x, target)
    assert jnp.allclose(loss, ref, rtol=RTOL, atol=ATOL), (loss, ref)

    # ignore_label path (mask out target == 1.0).
    loss_ign = dice_loss(x, target, ignore_label=1.0)
    jax.block_until_ready(loss_ign)
    ref_ign = _dice_loss_ref(x, target, ignore_label=1.0)
    assert jnp.allclose(loss_ign, ref_ign, rtol=RTOL, atol=ATOL), (loss_ign, ref_ign)

    # Ragged grid path: 5120 elems with a tiny 2-sub-block tile -> partial
    # (and, on 2-TC parts, duplicated) blocks exercised via the gated mask.
    xr = jax.random.uniform(k[2], (2, 5, 16, 32), dtype=jnp.float32)
    tr = (jax.random.uniform(k[3], (2, 5, 16, 32)) > 0.5).astype(jnp.float32)
    loss_r = dice_loss(xr, tr, tile_bytes=2 * SUB * 4)
    jax.block_until_ready(loss_r)
    ref_r = _dice_loss_ref(xr, tr)
    assert jnp.allclose(loss_r, ref_r, rtol=RTOL, atol=ATOL), (loss_r, ref_r)

    # numel not a multiple of 1024 -> jnp tail path (no pad copy).
    xp = jax.random.uniform(k[4], (3, 5, 7, 11), dtype=jnp.float32)
    tp = (jax.random.uniform(k[5], (3, 5, 7, 11)) > 0.5).astype(jnp.float32)
    loss_p = dice_loss(xp, tp)
    jax.block_until_ready(loss_p)
    ref_p = _dice_loss_ref(xp, tp)
    assert jnp.allclose(loss_p, ref_p, rtol=RTOL, atol=ATOL), (loss_p, ref_p)

    # Fewer than 1024 elements -> pure-jnp fallback path.
    xs = jax.random.uniform(k[6], (2, 3, 5, 7), dtype=jnp.float32)
    ts = (jax.random.uniform(k[7], (2, 3, 5, 7)) > 0.5).astype(jnp.float32)
    loss_s = dice_loss(xs, ts)
    jax.block_until_ready(loss_s)
    ref_s = _dice_loss_ref(xs, ts)
    assert jnp.allclose(loss_s, ref_s, rtol=RTOL, atol=ATOL), (loss_s, ref_s)

    # bf16 input path (dtype-scaled tile size, f32 in-kernel accumulation).
    xb = jax.random.uniform(k[8], (B, C, H, W)).astype(jnp.bfloat16)
    tb = (jax.random.uniform(k[9], (B, C, H, W)) > 0.5).astype(jnp.float32)
    loss_b = dice_loss(xb, tb)
    jax.block_until_ready(loss_b)
    ref_b = _dice_loss_ref(xb, tb)
    assert jnp.allclose(loss_b, ref_b, rtol=RTOL, atol=ATOL), (loss_b, ref_b)

    print("KERNEL_OK")
</pallas_src>

<mosaic_0001>
module attributes {stable_mosaic.version = 11 : i64} {
  func.func @_dice_partial_kernel(%arg0: i32, %arg1: i32, %arg2: memref<2x8x128xf32, #tpu.memory_space<vmem>>, %arg3: memref<2x8x128xf32, #tpu.memory_space<vmem>>, %arg4: memref<1x2x8x128xf32, #tpu.memory_space<vmem>>) attributes {dimension_semantics = [#tpu.dimension_semantics<parallel>, #tpu.dimension_semantics<arbitrary>], iteration_bounds = array<i64: 1, 1>, scalar_prefetch = 0 : i64, scratch_operands = 0 : i64, tpu.core_type = #tpu.core_type<tc>, window_params = [{transform_indices = @transform_0, window_bounds = array<i64: 2, 8, 128>}, {transform_indices = @transform_1, window_bounds = array<i64: 2, 8, 128>}, {transform_indices = @transform_2, window_bounds = array<i64: 1, 2, 8, 128>}]} {
    %c0_i32 = arith.constant 0 : i32
    %0 = arith.cmpi eq, %arg1, %c0_i32 : i32
    %1 = arith.extui %0 : i1 to i32
    %c0_i32_0 = arith.constant 0 : i32
    %2 = arith.cmpi ne, %1, %c0_i32_0 : i32
    scf.if %2 {
      %cst_22 = arith.constant 0.000000e+00 : f32
      %22 = vector.broadcast %cst_22 : f32 to vector<1x2x8x128xf32>
      %c0_23 = arith.constant 0 : index
      %c0_24 = arith.constant 0 : index
      %c0_25 = arith.constant 0 : index
      %c0_26 = arith.constant 0 : index
      %23 = vector.load %arg4[%c0_23, %c0_24, %c0_25, %c0_26] : memref<1x2x8x128xf32, #tpu.memory_space<vmem>>, vector<1x2x8x128xf32>
      tpu.vector_store %arg4[%c0_23, %c0_24, %c0_25, %c0_26], %22 {strides = array<i32>} : memref<1x2x8x128xf32, #tpu.memory_space<vmem>>, vector<1x2x8x128xf32>,
    } else {
    }
    %c0 = arith.constant 0 : index
    %c0_1 = arith.constant 0 : index
    %c0_2 = arith.constant 0 : index
    %3 = vector.load %arg2[%c0, %c0_1, %c0_2] : memref<2x8x128xf32, #tpu.memory_space<vmem>>, vector<2x8x128xf32>
    %c0_3 = arith.constant 0 : index
    %c0_4 = arith.constant 0 : index
    %c0_5 = arith.constant 0 : index
    %4 = vector.load %arg3[%c0_3, %c0_4, %c0_5] : memref<2x8x128xf32, #tpu.memory_space<vmem>>, vector<2x8x128xf32>
    %5 = arith.addf %3, %4 : vector<2x8x128xf32>
    %c0_6 = arith.constant 0 : index
    %c0_7 = arith.constant 0 : index
    %c0_8 = arith.constant 0 : index
    %c0_9 = arith.constant 0 : index
    %6 = vector.load %arg4[%c0_6, %c0_7, %c0_8, %c0_9] : memref<1x2x8x128xf32, #tpu.memory_space<vmem>>, vector<1x1x8x128xf32>
    %7 = vector.shape_cast %6 : vector<1x1x8x128xf32> to vector<8x128xf32>
    %8 = arith.mulf %3, %4 : vector<2x8x128xf32>
    %cst = arith.constant dense<0.000000e+00> : vector<8x128xf32>
    %9 = vector.multi_reduction <add>, %8, %cst [0] : vector<2x8x128xf32> to vector<8x128xf32>
    %10 = arith.addf %7, %9 : vector<8x128xf32>
    %c0_10 = arith.constant 0 : index
    %c0_11 = arith.constant 0 : index
    %c0_12 = arith.constant 0 : index
    %c0_13 = arith.constant 0 : index
    %11 = vector.load %arg4[%c0_10, %c0_11, %c0_12, %c0_13] : memref<1x2x8x128xf32, #tpu.memory_space<vmem>>, vector<1x1x8x128xf32>
    %12 = vector.shape_cast %11 : vector<1x1x8x128xf32> to vector<8x128xf32>
    %13 = vector.shape_cast %10 : vector<8x128xf32> to vector<1x1x8x128xf32>
    tpu.vector_store %arg4[%c0_10, %c0_11, %c0_12, %c0_13], %13 {strides = array<i32>} : memref<1x2x8x128xf32, #tpu.memory_space<vmem>>, vector<1x1x8x128xf32>,
    %c0_14 = arith.constant 0 : index
    %c1 = arith.constant 1 : index
    %c0_15 = arith.constant 0 : index
    %c0_16 = arith.constant 0 : index
    %14 = vector.load %arg4[%c0_14, %c1, %c0_15, %c0_16] : memref<1x2x8x128xf32, #tpu.memory_space<vmem>>, vector<1x1x8x128xf32>
    %15 = vector.shape_cast %14 : vector<1x1x8x128xf32> to vector<8x128xf32>
    %16 = arith.mulf %5, %5 : vector<2x8x128xf32>
    %cst_17 = arith.constant dense<0.000000e+00> : vector<8x128xf32>
    %17 = vector.multi_reduction <add>, %16, %cst_17 [0] : vector<2x8x128xf32> to vector<8x128xf32>
    %18 = arith.addf %15, %17 : vector<8x128xf32>
    %c0_18 = arith.constant 0 : index
    %c1_19 = arith.constant 1 : index
    %c0_20 = arith.constant 0 : index
    %c0_21 = arith.constant 0 : index
    %19 = vector.load %arg4[%c0_18, %c1_19, %c0_20, %c0_21] : memref<1x2x8x128xf32, #tpu.memory_space<vmem>>, vector<1x1x8x128xf32>
    %20 = vector.shape_cast %19 : vector<1x1x8x128xf32> to vector<8x128xf32>
    %21 = vector.shape_cast %18 : vector<8x128xf32> to vector<1x1x8x128xf32>
    tpu.vector_store %arg4[%c0_18, %c1_19, %c0_20, %c0_21], %21 {strides = array<i32>} : memref<1x2x8x128xf32, #tpu.memory_space<vmem>>, vector<1x1x8x128xf32>,
    return
  }
  func.func @transform_0(%arg0: i32, %arg1: i32) -> (i32, i32, i32) {
    %c1_i32 = arith.constant 1 : i32
    %0 = arith.muli %arg0, %c1_i32 : i32
    %1 = arith.addi %0, %arg1 : i32
    %c0_i32 = arith.constant 0 : i32
    %2 = arith.minsi %1, %c0_i32 : i32
    %c0_i32_0 = arith.constant 0 : i32
    %c0_i32_1 = arith.constant 0 : i32
    %c0_i32_2 = arith.constant 0 : i32
    return %2, %c0_i32_0, %c0_i32_1 : i32, i32, i32
  }
  func.func @transform_1(%arg0: i32, %arg1: i32) -> (i32, i32, i32) {
    %c1_i32 = arith.constant 1 : i32
    %0 = arith.muli %arg0, %c1_i32 : i32
    %1 = arith.addi %0, %arg1 : i32
    %c0_i32 = arith.constant 0 : i32
    %2 = arith.minsi %1, %c0_i32 : i32
    %c0_i32_0 = arith.constant 0 : i32
    %c0_i32_1 = arith.constant 0 : i32
    %c0_i32_2 = arith.constant 0 : i32
    return %2, %c0_i32_0, %c0_i32_1 : i32, i32, i32
  }
  func.func @transform_2(%arg0: i32, %arg1: i32) -> (i32, i32, i32, i32) {
    %c0_i32 = arith.constant 0 : i32
    %c0_i32_0 = arith.constant 0 : i32
    %c0_i32_1 = arith.constant 0 : i32
    %c0_i32_2 = arith.constant 0 : i32
    return %arg0, %c0_i32, %c0_i32_0, %c0_i32_1 : i32, i32, i32, i32
  }
}

</mosaic_0001>

<llo_original>
// kernel: _dice_loss_impl.1
$region0: #{_dice_loss_impl.1}
  #allocation0 [shape = 'u32[]', space=smem, size = 0x4, offset = 0x4, fixed_abs, tag = 'smem constant byte address 0x4 - core index']
  #allocation1 [shape = 'u32[72,128]{1,0:T(1,128)}', space=vmem, size = 0x9000, scoped, tag = 'internal scratch']
  %s0 = inlined_call_operand.vmem [shape: f32[2,8,128], index: 0, kind: input, shape index: {}]
  %s1 = inlined_call_operand.vmem [shape: f32[2,8,128], index: 1, kind: input, shape index: {}]
  %s2 = inlined_call_operand.vmem [shape: f32[1,2,8,128], index: 2, kind: output, shape index: {}]
  %s3 = sld [smem:[#allocation0]]
  $region22: #{_dice_loss_impl.1} parent=0
    _
  %s5 = ssub.s32 1, %s3
  %s6 = scalar_select 0, %s5, %s3
  // Predicated region
  $region2: #{_dice_loss_impl.1} parent=0 // pred_check
    _
  $region3: #{_dice_loss_impl.1} parent=0 // pred_check_branch
    %8 = sbr.rel (0) target = $region5
  $region4: #{_dice_loss_impl.1} parent=0 // pred_region
    %s9 = sadd.s32 0, 0
    %p10 = scmp.lt.s32.totalorder %s9, 0
    %s11 = scalar_select %p10, %s9, 0
    %s12 = smul.u32 2, %s11
    %p13 = scmp.lt.s32.totalorder %s12, 1
    %s14 = scalar_select %p13, %s12, 1
    %s15 = smul.addr %s14, 8
    %s16 = scalar_lea.vmem %s0, %s15
    %s17 = sadd.s32 0, 0
    %p18 = scmp.lt.s32.totalorder %s17, 0
    %s19 = scalar_select %p18, %s17, 0
    %s20 = smul.u32 2, %s19
  $region5: #{_dice_loss_impl.1} parent=0 // pred_fallthru
    _
  // Predicated region
  $region6: #{_dice_loss_impl.1} parent=0 // pred_check
    _
  $region7: #{_dice_loss_impl.1} parent=0 // pred_check_branch
    %22 = sbr.rel (0) target = $region9
  $region8: #{_dice_loss_impl.1} parent=0 // pred_region
    %s23 = sadd.s32 0, 0
    %p24 = scmp.lt.s32.totalorder %s23, 0
    %s25 = scalar_select %p24, %s23, 0
    %s26 = smul.u32 2, %s25
    %p27 = scmp.lt.s32.totalorder %s26, 1
    %s28 = scalar_select %p27, %s26, 1
    %s29 = smul.addr %s28, 8
    %s30 = scalar_lea.vmem %s1, %s29
    %s31 = sadd.s32 0, 0
    %p32 = scmp.lt.s32.totalorder %s31, 0
    %s33 = scalar_select %p32, %s31, 0
    %s34 = smul.u32 2, %s33
  $region9: #{_dice_loss_impl.1} parent=0 // pred_fallthru
    _
  %s35 = sadd.s32 0, 0
  %p36 = scmp.lt.s32.totalorder %s35, 0
  %s37 = scalar_select %p36, %s35, 0
  %s38 = smul.u32 2, %s37
  %p39 = scmp.lt.s32.totalorder %s38, 1
  %s40 = scalar_select %p39, %s38, 1
  %s41 = smul.addr %s40, 8
  %s42 = scalar_lea.vmem %s0, %s41
  %s43 = sadd.s32 0, 0
  %p44 = scmp.lt.s32.totalorder %s43, 0
  %s45 = scalar_select %p44, %s43, 0
  %s46 = smul.u32 2, %s45
  %p47 = scmp.lt.s32.totalorder %s46, 1
  %s48 = scalar_select %p47, %s46, 1
  %s49 = smul.addr %s48, 8
  %s50 = scalar_lea.vmem %s1, %s49
  %s51 = sadd.s32 0, 0
  %p52 = scmp.lt.s32.totalorder %s51, 0
  %s53 = scalar_select %p52, %s51, 0
  %s54 = smul.u32 2, %s53
  %p55 = scmp.lt.s32.totalorder %s54, 1
  %s56 = scalar_select %p55, %s54, 1
  %s57 = smul.addr %s56, 8
  %s58 = scalar_lea.vmem %s0, %s57
  %s59 = sadd.s32 0, 0
  %p60 = scmp.lt.s32.totalorder %s59, 0
  %s61 = scalar_select %p60, %s59, 0
  %s62 = smul.u32 2, %s61
  %s63 = sadd.s32 0, 0
  %p64 = scmp.lt.s32.totalorder %s63, 0
  %s65 = scalar_select %p64, %s63, 0
  %s66 = smul.u32 2, %s65
  %p67 = scmp.lt.s32.totalorder %s66, 1
  %s68 = scalar_select %p67, %s66, 1
  %s69 = smul.addr %s68, 8
  %s70 = scalar_lea.vmem %s1, %s69
  %s71 = sadd.s32 0, 0
  %p72 = scmp.lt.s32.totalorder %s71, 0
  %s73 = scalar_select %p72, %s71, 0
  %s74 = smul.u32 2, %s73
  %p75 = scmp.eq.s32.totalorder 0, 0
  // Predicated region
  $region10: #{_dice_loss_impl.1} parent=0 // pred_check
    %p76 = pneg %p75
  $region11: #{_dice_loss_impl.1} parent=0 // pred_check_branch
    %78 = sbr.rel (%p76) target = $region13
  $region12: #{_dice_loss_impl.1} parent=0 // pred_region
    %79 = vst [vmem:[%s2] sm:$0xff] 0.0
    %80 = vst [vmem:[%s2 + $0x8] sm:$0xff] 0.0
  $region13: #{_dice_loss_impl.1} parent=0 // pred_fallthru
    _
  %v81 = vld [vmem:[%s58] sm:$0xff]
  %v82 = vld [vmem:[%s58 + $0x8] sm:$0xff]
  %v83 = vld [vmem:[%s70] sm:$0xff]
  %v84 = vld [vmem:[%s70 + $0x8] sm:$0xff]
  %v85 = vadd.f32 %v81, %v83
  %v86 = vadd.f32 %v82, %v84
  %v87 = vld [vmem:[%s2] sm:$0xff]
  %v88 = vmul.f32 %v81, %v83
  %v89 = vmul.f32 %v82, %v84
  %v90 = vadd.f32 %v88, %v89
  %v91 = vadd.f32 %v87, %v90
  %92 = vst [vmem:[%s2] sm:$0xff] %v91
  %s93 = scalar_lea.vmem %s2, 8
  %v94 = vld [vmem:[%s93] sm:$0xff]
  %v95 = vmul.f32 %v85, %v85
  %v96 = vmul.f32 %v86, %v86
  %v97 = vadd.f32 %v95, %v96
  %v98 = vadd.f32 %v94, %v97
  %99 = vst [vmem:[%s93] sm:$0xff] %v98
  // Predicated region
  $region14: #{_dice_loss_impl.1} parent=0 // pred_check
    _
  $region15: #{_dice_loss_impl.1} parent=0 // pred_check_branch
    %101 = sbr.rel (0) target = $region17
  $region16: #{_dice_loss_impl.1} parent=0 // pred_region
    _
  $region17: #{_dice_loss_impl.1} parent=0 // pred_fallthru
    _
  // Predicated region
  $region18: #{_dice_loss_impl.1} parent=0 // pred_check
    _
  $region19: #{_dice_loss_impl.1} parent=0 // pred_check_branch
    %103 = sbr.rel (0) target = $region21
  $region20: #{_dice_loss_impl.1} parent=0 // pred_region
    _
  $region21: #{_dice_loss_impl.1} parent=0 // pred_fallthru
    _

</llo_original>
